<compile_context>
chip_gen: v5e
topology: v5e:2x2
jax: 0.10.0
libtpu: 0.0.40
codegen_flags: <defaults>
</compile_context>

<pallas_src>
import jax
import jax.numpy as jnp
from jax.experimental import pallas as pl
from jax.experimental.pallas import tpu as pltpu

_EPS = 1e-5          # nn.LayerNorm default eps
_SLOPE = 0.01        # nn.LeakyReLU default negative_slope


def _num_tensorcores() -> int:
    """Best-effort TensorCores-per-device count (2 on v7x and megacore v4/v5p)."""
    try:
        kind = jax.devices()[0].device_kind.lower()
    except Exception:
        return 1
    return 2 if any(tag in kind for tag in ("v7", "v5p", "v4")) else 1


def _att0_12_kernel(x_ref, wf_ref, bf_ref, g_ref, be_ref, ba_ref, o_ref):
    """One batch-block (Bb batch elements) per grid step."""
    Bb, N, D = x_ref.shape
    gamma = g_ref[...]        # (1, D)
    beta = be_ref[...]        # (1, D)
    ba = ba_ref[0]            # scalar attention bias, read from SMEM

    def layer_norm(t):
        mu = jnp.mean(t, axis=-1, keepdims=True)
        var = jnp.mean((t - mu) ** 2, axis=-1, keepdims=True)
        return (t - mu) * jax.lax.rsqrt(var + _EPS) * gamma + beta

    def leaky(t):
        return jnp.where(t >= 0, t, _SLOPE * t)

    # --- shared LayerNorm + FUSED projection over all Bb*N rows -------------
    #   y = LN(x) @ [W | W@A] + [bw | bw@A]  -> h = y[:, :D], s = y[:, D:D+2]
    # One MXU pass; no serial h -> s dependency.
    x2 = x_ref[...].reshape(Bb * N, D)
    xn = layer_norm(x2)                                                # LN(x)
    y = jnp.dot(xn, wf_ref[...],
                preferred_element_type=jnp.float32) + bf_ref[...]      # (Bb*N, D+2)
    h = y[:, :D]                          # projected embeddings  (Bb*N, D)
    s = y[:, D:D + 2]                     # [a1·h , a2·h] scores  (Bb*N, 2)
    vln = layer_norm(h)                   # values share the module's LayerNorm

    s3 = s.reshape(Bb, N, 2)
    vln3 = vln.reshape(Bb, N, D)

    # --- attention scores; query row 0 is dropped here (the torch [:, 1:, :])
    ei = s3[:, 1:, 0:1]                                # (Bb, N-1, 1)
    ej = jnp.transpose(s3[:, :, 1:2], (0, 2, 1))       # (Bb, 1, N) tiny transpose
    e = leaky(ei + ej + ba)                            # (Bb, N-1, N)

    # softmax over neighbours j (last axis)
    e_max = jnp.max(e, axis=-1, keepdims=True)
    p = jnp.exp(e - e_max)
    # exact reciprocal keeps the 2e-5 correctness check; approx=True would
    # offload the divide to the EUP slot if a looser tolerance is acceptable.
    alphas = p * pl.reciprocal(jnp.sum(p, axis=-1, keepdims=True), approx=False)

    # sum_j alphas * LN(h_j)  ==  alphas @ LN(h)
    att = jnp.einsum('bqk,bkd->bqd', alphas, vln3,
                     preferred_element_type=jnp.float32)               # (Bb, N-1, D)

    # em_out = dropout(leaky_relu(att_value))   (dropout == identity in eval)
    o_ref[...] = leaky(att).astype(o_ref.dtype)


@jax.jit
def att0_12_forward(x, w, bw, a1, a2, ba, gamma, beta):
    """x: (B, N, D) float32. Returns (B, N-1, D) like the torch module."""
    B, N, D = x.shape

    # Split across batch only when the chip has 2 TensorCores AND each core
    # gets enough rows (>= 128) to amortize megacore dispatch; otherwise a
    # single grid step (strictly best on single-TC v5e/v6e and for tiny B*N).
    two_tc = _num_tensorcores() >= 2
    G = 2 if (two_tc and B % 2 == 0 and (B // 2) * N >= 128) else 1
    Bb = B // G

    # Fold the attention projection into the main projection (wrapper-side):
    #   Wf = [W | W@A] (D, D+2), bf = [bw | bw@A] (D+2,)
    A = jnp.stack([a1, a2], axis=1)                                   # (D, 2)
    Wf = jnp.concatenate([w, w @ A], axis=1)                          # (D, D+2)
    bf = jnp.concatenate([bw, bw @ A], axis=0).reshape(1, D + 2)      # (1, D+2)

    return pl.pallas_call(
        _att0_12_kernel,
        out_shape=jax.ShapeDtypeStruct((B, N - 1, D), x.dtype),
        grid_spec=pltpu.PrefetchScalarGridSpec(
            num_scalar_prefetch=0,
            grid=(G,),
            in_specs=[
                pl.BlockSpec((Bb, N, D), lambda g: (g, 0, 0)),        # x
                pl.BlockSpec((D, D + 2), lambda g: (0, 0)),           # [W | W@A]
                pl.BlockSpec((1, D + 2), lambda g: (0, 0)),           # fused bias
                pl.BlockSpec((1, D), lambda g: (0, 0)),               # LN gamma
                pl.BlockSpec((1, D), lambda g: (0, 0)),               # LN beta
                pl.BlockSpec(memory_space=pltpu.MemorySpace.SMEM),    # b_a scalar
            ],
            out_specs=pl.BlockSpec((Bb, N - 1, D), lambda g: (g, 0, 0)),
        ),
        compiler_params=pltpu.CompilerParams(
            dimension_semantics=("parallel",) if G > 1 else ("arbitrary",)),
    )(x, Wf, bf, gamma.reshape(1, D), beta.reshape(1, D),
      jnp.asarray(ba, jnp.float32).reshape(1,))


def att0_12_reference(x, w, bw, a1, a2, ba, gamma, beta):
    """Pure-JAX reference mirroring the PyTorch forward semantics."""
    def layer_norm(t):
        mu = t.mean(-1, keepdims=True)
        var = ((t - mu) ** 2).mean(-1, keepdims=True)
        return (t - mu) / jnp.sqrt(var + _EPS) * gamma + beta

    def leaky(t):
        return jnp.where(t >= 0, t, _SLOPE * t)

    xn = layer_norm(x)                                   # (B, N, D)
    h = xn @ w + bw                                      # (B, N, D)
    ei = h @ a1                                          # (B, N)
    ej = h @ a2                                          # (B, N)
    e = leaky(ei[:, :, None] + ej[:, None, :] + ba)      # (B, N, N)
    alphas = jax.nn.softmax(e, axis=-1)                  # softmax over j
    vln = layer_norm(h)                                  # (B, N, D)
    att = jnp.einsum('bij,bjd->bid', alphas, vln)        # sum over j
    out = leaky(att)
    return out[:, 1:, :]


if __name__ == "__main__":
    B, N, D = 4, 8, 32   # batch, nodes (seq), em_dim

    key = jax.random.PRNGKey(0)
    kx, kw, kbw, ka1, ka2 = jax.random.split(key, 5)

    x = jax.random.normal(kx, (B, N, D), dtype=jnp.float32)

    # Deterministic synthetic parameters (shapes from the module's __init__).
    w = jax.random.normal(kw, (D, D), dtype=jnp.float32) / jnp.sqrt(D)   # Linear(D, D), stored (in, out)
    bw = jax.random.normal(kbw, (D,), dtype=jnp.float32) * 0.01
    a1 = jax.random.normal(ka1, (D,), dtype=jnp.float32) * 0.1           # first half of Linear(2D, 1)
    a2 = jax.random.normal(ka2, (D,), dtype=jnp.float32) * 0.1           # second half
    ba = jnp.float32(0.05)                                               # its bias
    gamma = jnp.ones((D,), dtype=jnp.float32)                            # LayerNorm weight
    beta = jnp.zeros((D,), dtype=jnp.float32)                            # LayerNorm bias

    out = att0_12_forward(x, w, bw, a1, a2, ba, gamma, beta)
    out = jax.block_until_ready(out)

    ref = att0_12_reference(x, w, bw, a1, a2, ba, gamma, beta)
    assert out.shape == (B, N - 1, D), out.shape
    assert jnp.allclose(out, ref, rtol=2e-5, atol=2e-5), (
        float(jnp.max(jnp.abs(out - ref))))

    print("KERNEL_OK")
</pallas_src>

<mosaic_0001>
module attributes {stable_mosaic.version = 11 : i64} {
  func.func @_att0_12_kernel(%arg0: i32, %arg1: memref<4x8x32xf32, #tpu.memory_space<vmem>>, %arg2: memref<32x34xf32, #tpu.memory_space<vmem>>, %arg3: memref<1x34xf32, #tpu.memory_space<vmem>>, %arg4: memref<1x32xf32, #tpu.memory_space<vmem>>, %arg5: memref<1x32xf32, #tpu.memory_space<vmem>>, %arg6: memref<1xf32, #tpu.memory_space<smem>>, %arg7: memref<4x7x32xf32, #tpu.memory_space<vmem>>) attributes {dimension_semantics = [#tpu.dimension_semantics<arbitrary>], iteration_bounds = array<i64: 1>, scalar_prefetch = 0 : i64, scratch_operands = 0 : i64, tpu.core_type = #tpu.core_type<tc>, window_params = [{transform_indices = @transform_0, window_bounds = array<i64: 4, 8, 32>}, {pipeline_mode = #tpu.pipeline_mode<synchronous>, transform_indices = @transform_1, window_bounds = array<i64: 32, 34>}, {pipeline_mode = #tpu.pipeline_mode<synchronous>, transform_indices = @transform_2, window_bounds = array<i64: 1, 34>}, {pipeline_mode = #tpu.pipeline_mode<synchronous>, transform_indices = @transform_3, window_bounds = array<i64: 1, 32>}, {pipeline_mode = #tpu.pipeline_mode<synchronous>, transform_indices = @transform_4, window_bounds = array<i64: 1, 32>}, {transform_indices = @transform_5, window_bounds = array<i64: 1>}, {transform_indices = @transform_6, window_bounds = array<i64: 4, 7, 32>}]} {
    %c0 = arith.constant 0 : index
    %c0_0 = arith.constant 0 : index
    %0 = vector.load %arg4[%c0, %c0_0] : memref<1x32xf32, #tpu.memory_space<vmem>>, vector<1x32xf32>
    %c0_1 = arith.constant 0 : index
    %c0_2 = arith.constant 0 : index
    %1 = vector.load %arg5[%c0_1, %c0_2] : memref<1x32xf32, #tpu.memory_space<vmem>>, vector<1x32xf32>
    %c0_3 = arith.constant 0 : index
    %2 = memref.load %arg6[%c0_3] : memref<1xf32, #tpu.memory_space<smem>>
    %c0_4 = arith.constant 0 : index
    %c0_5 = arith.constant 0 : index
    %c0_6 = arith.constant 0 : index
    %3 = vector.load %arg1[%c0_4, %c0_5, %c0_6] : memref<4x8x32xf32, #tpu.memory_space<vmem>>, vector<4x8x32xf32>
    %4 = vector.shape_cast %3 : vector<4x8x32xf32> to vector<32x32xf32>
    %cst = arith.constant dense<0.000000e+00> : vector<32xf32>
    %5 = vector.multi_reduction <add>, %4, %cst [1] : vector<32x32xf32> to vector<32xf32>
    %6 = vector.shape_cast %5 : vector<32xf32> to vector<32x1xf32>
    %cst_7 = arith.constant 3.200000e+01 : f32
    %7 = vector.broadcast %cst_7 : f32 to vector<32x1xf32>
    %8 = arith.divf %6, %7 : vector<32x1xf32>
    %9 = vector.broadcast %8 : vector<32x1xf32> to vector<32x32xf32>
    %10 = arith.subf %4, %9 : vector<32x32xf32>
    %11 = arith.mulf %10, %10 : vector<32x32xf32>
    %cst_8 = arith.constant dense<0.000000e+00> : vector<32xf32>
    %12 = vector.multi_reduction <add>, %11, %cst_8 [1] : vector<32x32xf32> to vector<32xf32>
    %13 = vector.shape_cast %12 : vector<32xf32> to vector<32x1xf32>
    %cst_9 = arith.constant 3.200000e+01 : f32
    %14 = vector.broadcast %cst_9 : f32 to vector<32x1xf32>
    %15 = arith.divf %13, %14 : vector<32x1xf32>
    %16 = vector.broadcast %8 : vector<32x1xf32> to vector<32x32xf32>
    %17 = arith.subf %4, %16 : vector<32x32xf32>
    %cst_10 = arith.constant 9.99999974E-6 : f32
    %18 = vector.broadcast %cst_10 : f32 to vector<32x1xf32>
    %19 = arith.addf %15, %18 : vector<32x1xf32>
    %20 = math.rsqrt %19 : vector<32x1xf32>
    %21 = vector.broadcast %20 : vector<32x1xf32> to vector<32x32xf32>
    %22 = arith.mulf %17, %21 : vector<32x32xf32>
    %23 = vector.broadcast %0 : vector<1x32xf32> to vector<32x32xf32>
    %24 = arith.mulf %22, %23 : vector<32x32xf32>
    %25 = vector.broadcast %1 : vector<1x32xf32> to vector<32x32xf32>
    %26 = arith.addf %24, %25 : vector<32x32xf32>
    %c0_11 = arith.constant 0 : index
    %c0_12 = arith.constant 0 : index
    %27 = vector.load %arg2[%c0_11, %c0_12] : memref<32x34xf32, #tpu.memory_space<vmem>>, vector<32x34xf32>
    %cst_13 = arith.constant dense<0.000000e+00> : vector<32x34xf32>
    %28 = tpu.matmul %26, %27, %cst_13 {dimension_numbers = #tpu.dot_dimension_numbers<[1], [0], [0], [1], [0, 0, 1, 1], [], []>} : vector<32x32xf32>, vector<32x34xf32>, vector<32x34xf32> -> vector<32x34xf32>
    %c0_14 = arith.constant 0 : index
    %c0_15 = arith.constant 0 : index
    %29 = vector.load %arg3[%c0_14, %c0_15] : memref<1x34xf32, #tpu.memory_space<vmem>>, vector<1x34xf32>
    %30 = vector.broadcast %29 : vector<1x34xf32> to vector<32x34xf32>
    %31 = arith.addf %28, %30 : vector<32x34xf32>
    %32 = vector.extract_strided_slice %31 {offsets = [0, 0], sizes = [32, 32], strides = [1, 1]} : vector<32x34xf32> to vector<32x32xf32>
    %33 = vector.extract_strided_slice %31 {offsets = [0, 32], sizes = [32, 2], strides = [1, 1]} : vector<32x34xf32> to vector<32x2xf32>
    %cst_16 = arith.constant dense<0.000000e+00> : vector<32xf32>
    %34 = vector.multi_reduction <add>, %32, %cst_16 [1] : vector<32x32xf32> to vector<32xf32>
    %35 = vector.shape_cast %34 : vector<32xf32> to vector<32x1xf32>
    %cst_17 = arith.constant 3.200000e+01 : f32
    %36 = vector.broadcast %cst_17 : f32 to vector<32x1xf32>
    %37 = arith.divf %35, %36 : vector<32x1xf32>
    %38 = vector.broadcast %37 : vector<32x1xf32> to vector<32x32xf32>
    %39 = arith.subf %32, %38 : vector<32x32xf32>
    %40 = arith.mulf %39, %39 : vector<32x32xf32>
    %cst_18 = arith.constant dense<0.000000e+00> : vector<32xf32>
    %41 = vector.multi_reduction <add>, %40, %cst_18 [1] : vector<32x32xf32> to vector<32xf32>
    %42 = vector.shape_cast %41 : vector<32xf32> to vector<32x1xf32>
    %cst_19 = arith.constant 3.200000e+01 : f32
    %43 = vector.broadcast %cst_19 : f32 to vector<32x1xf32>
    %44 = arith.divf %42, %43 : vector<32x1xf32>
    %45 = vector.broadcast %37 : vector<32x1xf32> to vector<32x32xf32>
    %46 = arith.subf %32, %45 : vector<32x32xf32>
    %cst_20 = arith.constant 9.99999974E-6 : f32
    %47 = vector.broadcast %cst_20 : f32 to vector<32x1xf32>
    %48 = arith.addf %44, %47 : vector<32x1xf32>
    %49 = math.rsqrt %48 : vector<32x1xf32>
    %50 = vector.broadcast %49 : vector<32x1xf32> to vector<32x32xf32>
    %51 = arith.mulf %46, %50 : vector<32x32xf32>
    %52 = vector.broadcast %0 : vector<1x32xf32> to vector<32x32xf32>
    %53 = arith.mulf %51, %52 : vector<32x32xf32>
    %54 = vector.broadcast %1 : vector<1x32xf32> to vector<32x32xf32>
    %55 = arith.addf %53, %54 : vector<32x32xf32>
    %56 = vector.shape_cast %33 : vector<32x2xf32> to vector<4x8x2xf32>
    %57 = vector.shape_cast %55 : vector<32x32xf32> to vector<4x8x32xf32>
    %58 = vector.extract_strided_slice %56 {offsets = [0, 1, 0], sizes = [4, 7, 1], strides = [1, 1, 1]} : vector<4x8x2xf32> to vector<4x7x1xf32>
    %59 = vector.extract_strided_slice %56 {offsets = [0, 0, 1], sizes = [4, 8, 1], strides = [1, 1, 1]} : vector<4x8x2xf32> to vector<4x8x1xf32>
    %60 = tpu.transpose %59, [0, 2, 1] : vector<4x8x1xf32> -> vector<4x1x8xf32>
    %61 = vector.broadcast %58 : vector<4x7x1xf32> to vector<4x7x8xf32>
    %62 = vector.broadcast %60 : vector<4x1x8xf32> to vector<4x7x8xf32>
    %63 = arith.addf %61, %62 : vector<4x7x8xf32>
    %64 = vector.broadcast %2 : f32 to vector<4x7x8xf32>
    %65 = arith.addf %63, %64 : vector<4x7x8xf32>
    %cst_21 = arith.constant 0.000000e+00 : f32
    %66 = vector.broadcast %cst_21 : f32 to vector<4x7x8xf32>
    %67 = arith.cmpf oge, %65, %66 : vector<4x7x8xf32>
    %cst_22 = arith.constant 0.00999999977 : f32
    %68 = vector.broadcast %cst_22 : f32 to vector<4x7x8xf32>
    %69 = arith.mulf %68, %65 : vector<4x7x8xf32>
    %70 = arith.select %67, %65, %69 : vector<4x7x8xi1>, vector<4x7x8xf32>
    %cst_23 = arith.constant dense<0xFF800000> : vector<4x7xf32>
    %71 = vector.multi_reduction <maximumf>, %70, %cst_23 [2] : vector<4x7x8xf32> to vector<4x7xf32>
    %72 = vector.shape_cast %71 : vector<4x7xf32> to vector<4x7x1xf32>
    %73 = vector.broadcast %72 : vector<4x7x1xf32> to vector<4x7x8xf32>
    %74 = arith.subf %70, %73 : vector<4x7x8xf32>
    %75 = math.exp %74 : vector<4x7x8xf32>
    %cst_24 = arith.constant dense<0.000000e+00> : vector<4x7xf32>
    %76 = vector.multi_reduction <add>, %75, %cst_24 [2] : vector<4x7x8xf32> to vector<4x7xf32>
    %77 = vector.shape_cast %76 : vector<4x7xf32> to vector<4x7x1xf32>
    %78 = tpu.reciprocal %77 : vector<4x7x1xf32> -> vector<4x7x1xf32>
    %79 = vector.broadcast %78 : vector<4x7x1xf32> to vector<4x7x8xf32>
    %80 = arith.mulf %75, %79 : vector<4x7x8xf32>
    "tpu.trace_start"() <{level = 10 : i32, message = "bqk,bkd->bqd"}> : () -> ()
    %cst_25 = arith.constant dense<0.000000e+00> : vector<4x7x32xf32>
    %81 = tpu.matmul %80, %57, %cst_25 {dimension_numbers = #tpu.dot_dimension_numbers<[2], [1], [1], [2], [0, 0, 0, 1, 1, 2], [0], [0]>} : vector<4x7x8xf32>, vector<4x8x32xf32>, vector<4x7x32xf32> -> vector<4x7x32xf32>
    %cst_26 = arith.constant 0.000000e+00 : f32
    "tpu.trace_stop"() : () -> ()
    %82 = vector.broadcast %cst_26 : f32 to vector<4x7x32xf32>
    %83 = arith.cmpf oge, %81, %82 : vector<4x7x32xf32>
    %cst_27 = arith.constant 0.00999999977 : f32
    %84 = vector.broadcast %cst_27 : f32 to vector<4x7x32xf32>
    %85 = arith.mulf %84, %81 : vector<4x7x32xf32>
    %86 = arith.select %83, %81, %85 : vector<4x7x32xi1>, vector<4x7x32xf32>
    %c0_28 = arith.constant 0 : index
    %c0_29 = arith.constant 0 : index
    %c0_30 = arith.constant 0 : index
    %87 = vector.load %arg7[%c0_28, %c0_29, %c0_30] : memref<4x7x32xf32, #tpu.memory_space<vmem>>, vector<4x7x32xf32>
    tpu.vector_store %arg7[%c0_28, %c0_29, %c0_30], %86 {strides = array<i32>} : memref<4x7x32xf32, #tpu.memory_space<vmem>>, vector<4x7x32xf32>,
    return
  }
  func.func @transform_0(%arg0: i32) -> (i32, i32, i32) {
    %c0_i32 = arith.constant 0 : i32
    %c0_i32_0 = arith.constant 0 : i32
    %c0_i32_1 = arith.constant 0 : i32
    return %arg0, %c0_i32, %c0_i32_0 : i32, i32, i32
  }
  func.func @transform_1(%arg0: i32) -> (i32, i32) {
    %c0_i32 = arith.constant 0 : i32
    %c0_i32_0 = arith.constant 0 : i32
    %c0_i32_1 = arith.constant 0 : i32
    return %c0_i32, %c0_i32_0 : i32, i32
  }
  func.func @transform_2(%arg0: i32) -> (i32, i32) {
    %c0_i32 = arith.constant 0 : i32
    %c0_i32_0 = arith.constant 0 : i32
    %c0_i32_1 = arith.constant 0 : i32
    return %c0_i32, %c0_i32_0 : i32, i32
  }
  func.func @transform_3(%arg0: i32) -> (i32, i32) {
    %c0_i32 = arith.constant 0 : i32
    %c0_i32_0 = arith.constant 0 : i32
    %c0_i32_1 = arith.constant 0 : i32
    return %c0_i32, %c0_i32_0 : i32, i32
  }
  func.func @transform_4(%arg0: i32) -> (i32, i32) {
    %c0_i32 = arith.constant 0 : i32
    %c0_i32_0 = arith.constant 0 : i32
    %c0_i32_1 = arith.constant 0 : i32
    return %c0_i32, %c0_i32_0 : i32, i32
  }
  func.func @transform_5(%arg0: i32) -> i32 {
    %c0_i32 = arith.constant 0 : i32
    %c0_i32_0 = arith.constant 0 : i32
    return %c0_i32 : i32
  }
  func.func @transform_6(%arg0: i32) -> (i32, i32, i32) {
    %c0_i32 = arith.constant 0 : i32
    %c0_i32_0 = arith.constant 0 : i32
    %c0_i32_1 = arith.constant 0 : i32
    return %arg0, %c0_i32, %c0_i32_0 : i32, i32, i32
  }
}

</mosaic_0001>

<llo_original>
// kernel: att0_12_forward.1
$region0: #{att0_12_forward.1}
  #allocation0 [shape = 'u32[]', space=smem, size = 0x4, offset = 0x4, fixed_abs, tag = 'smem constant byte address 0x4 - core index']
  #allocation1 [shape = 'u32[72,128]{1,0:T(1,128)}', space=vmem, size = 0x9000, scoped, tag = 'internal scratch']
  #allocation2 [shape = 'f32[1]{0:T(128)S(6)}', space=smem, size = 0x200, scoped, tag = 'scoped memory for att0_12_forward.1']
  %s0 = inlined_call_operand.vmem [shape: f32[4,8,32], index: 0, kind: input, shape index: {}]
  %s1 = inlined_call_operand.vmem [shape: f32[32,34], index: 1, kind: input, shape index: {}]
  %s2 = inlined_call_operand.vmem [shape: f32[1,34], index: 2, kind: input, shape index: {}]
  %s3 = inlined_call_operand.vmem [shape: f32[1,32], index: 3, kind: input, shape index: {}]
  %s4 = inlined_call_operand.vmem [shape: f32[1,32], index: 4, kind: input, shape index: {}]
  %s5 = inlined_call_operand.<no memory space> [shape: f32[1], index: 5, kind: input, shape index: {}]
  %s6 = inlined_call_operand.vmem [shape: f32[4,7,32], index: 6, kind: output, shape index: {}]
  %s7 = sld [smem:[#allocation0]]
  $region34: #{att0_12_forward.1} parent=0
    _
  %s9 = ssub.s32 1, %s7
  %s10 = scalar_select 0, %s9, %s7
  %11 = sst [smem:[#allocation2]] %s5
  // Predicated region
  $region2: #{att0_12_forward.1} parent=0 // pred_check
    _
  $region3: #{att0_12_forward.1} parent=0 // pred_check_branch
    %13 = sbr.rel (0) target = $region5
  $region4: #{att0_12_forward.1} parent=0 // pred_region
    _
  $region5: #{att0_12_forward.1} parent=0 // pred_fallthru
    _
  // Predicated region
  $region6: #{att0_12_forward.1} parent=0 // pred_check
    _
  $region7: #{att0_12_forward.1} parent=0 // pred_check_branch
    %15 = sbr.rel (0) target = $region9
  $region8: #{att0_12_forward.1} parent=0 // pred_region
    _
  $region9: #{att0_12_forward.1} parent=0 // pred_fallthru
    _
  // Predicated region
  $region10: #{att0_12_forward.1} parent=0 // pred_check
    _
  $region11: #{att0_12_forward.1} parent=0 // pred_check_branch
    %17 = sbr.rel (0) target = $region13
  $region12: #{att0_12_forward.1} parent=0 // pred_region
    _
  $region13: #{att0_12_forward.1} parent=0 // pred_fallthru
    _
  // Predicated region
  $region14: #{att0_12_forward.1} parent=0 // pred_check
    _
  $region15: #{att0_12_forward.1} parent=0 // pred_check_branch
    %19 = sbr.rel (0) target = $region17
  $region16: #{att0_12_forward.1} parent=0 // pred_region
    _
  $region17: #{att0_12_forward.1} parent=0 // pred_fallthru
    _
  // Predicated region
  $region18: #{att0_12_forward.1} parent=0 // pred_check
    _
  $region19: #{att0_12_forward.1} parent=0 // pred_check_branch
    %21 = sbr.rel (0) target = $region21
  $region20: #{att0_12_forward.1} parent=0 // pred_region
    _
  $region21: #{att0_12_forward.1} parent=0 // pred_fallthru
    _
  // Predicated region
  $region22: #{att0_12_forward.1} parent=0 // pred_check
    _
  $region23: #{att0_12_forward.1} parent=0 // pred_check_branch
    %23 = sbr.rel (0) target = $region25
  $region24: #{att0_12_forward.1} parent=0 // pred_region
    _
  $region25: #{att0_12_forward.1} parent=0 // pred_fallthru
    _
  %v24 = vld [vmem:[%s3] sm:$0x1]
  %v25 = vld [vmem:[%s4] sm:$0x1]
  %s26 = sld [smem:[#allocation2]]
  %v27 = vld [vmem:[%s0] sm:$0xff]
  %v28 = vld [vmem:[%s0 + $0x8] sm:$0xff]
  %v29 = vld [vmem:[%s0 + $0x10] sm:$0xff]
  %v30 = vld [vmem:[%s0 + $0x18] sm:$0xff]
  %vm31 = vcmask 261120
  %v32 = vsel %vm31, %v27, 0.0
  %33 = vadd.xlane.f32.xlu0 %v32
  %v34 = vpop.xlane.xlu0 %33
  %v35 = vsel %vm31, %v28, 0.0
  %36 = vadd.xlane.f32.xlu0 %v35
  %v37 = vpop.xlane.xlu0 %36
  %v38 = vsel %vm31, %v29, 0.0
  %39 = vadd.xlane.f32.xlu0 %v38
  %v40 = vpop.xlane.xlu0 %39
  %v41 = vsel %vm31, %v30, 0.0
  %42 = vadd.xlane.f32.xlu0 %v41
  %v43 = vpop.xlane.xlu0 %42
  %v44 = vrcp.pop 32.0
  %v45 = vmul.f32 32.0, %v44
  %v46 = vsub.f32 1.0, %v45
  %v47 = vmul.f32 %v44, %v46
  %v48 = vadd.f32 %v44, %v47
  %vm49 = vweird.f32 %v44
  %v50 = vsel %vm49, %v44, %v48
  %v51 = vmul.f32 %v34, %v50
  %v52 = vmul.f32 %v37, %v50
  %v53 = vmul.f32 %v40, %v50
  %v54 = vmul.f32 %v43, %v50
  %v55 = vsub.f32 %v27, %v51
  %v56 = vsub.f32 %v28, %v52
  %v57 = vsub.f32 %v29, %v53
  %v58 = vsub.f32 %v30, %v54
  %v59 = vmul.f32 %v55, %v55
  %v60 = vmul.f32 %v56, %v56
  %v61 = vmul.f32 %v57, %v57
  %v62 = vmul.f32 %v58, %v58
  %v63 = vsel %vm31, %v59, 0.0
  %64 = vadd.xlane.f32.xlu0 %v63
  %v65 = vpop.xlane.xlu0 %64
  %v66 = vsel %vm31, %v60, 0.0
  %67 = vadd.xlane.f32.xlu0 %v66
  %v68 = vpop.xlane.xlu0 %67
  %v69 = vsel %vm31, %v61, 0.0
  %70 = vadd.xlane.f32.xlu0 %v69
  %v71 = vpop.xlane.xlu0 %70
  %v72 = vsel %vm31, %v62, 0.0
  %73 = vadd.xlane.f32.xlu0 %v72
  %v74 = vpop.xlane.xlu0 %73
  %v75 = vmul.f32 %v65, %v50
  %v76 = vmul.f32 %v68, %v50
  %v77 = vmul.f32 %v71, %v50
  %v78 = vmul.f32 %v74, %v50
  %v79 = vadd.f32 %v75, 1e-05
  %v80 = vadd.f32 %v76, 1e-05
  %v81 = vadd.f32 %v77, 1e-05
  %v82 = vadd.f32 %v78, 1e-05
  %v83 = vrsqrt.pop %v79
  %v84 = vmul.f32 %v83, %v79
  %v85 = vmul.f32 %v84, %v83
  %v86 = vmul.f32 0.5, %v85
  %v87 = vsub.f32 1.5, %v86
  %v88 = vmul.f32 %v83, %v87
  %vm89 = vweird.f32 %v79
  %vm90 = vweird.f32 %v83
  %vm91 = vmor %vm89, %vm90
  %v92 = vsel %vm91, %v83, %v88
  %v93 = vrsqrt.pop %v80
  %v94 = vmul.f32 %v93, %v80
  %v95 = vmul.f32 %v94, %v93
  %v96 = vmul.f32 0.5, %v95
  %v97 = vsub.f32 1.5, %v96
  %v98 = vmul.f32 %v93, %v97
  %vm99 = vweird.f32 %v80
  %vm100 = vweird.f32 %v93
  %vm101 = vmor %vm99, %vm100
  %v102 = vsel %vm101, %v93, %v98
  %v103 = vrsqrt.pop %v81
  %v104 = vmul.f32 %v103, %v81
  %v105 = vmul.f32 %v104, %v103
  %v106 = vmul.f32 0.5, %v105
  %v107 = vsub.f32 1.5, %v106
  %v108 = vmul.f32 %v103, %v107
  %vm109 = vweird.f32 %v81
  %vm110 = vweird.f32 %v103
  %vm111 = vmor %vm109, %vm110
  %v112 = vsel %vm111, %v103, %v108
  %v113 = vrsqrt.pop %v82
  %v114 = vmul.f32 %v113, %v82
  %v115 = vmul.f32 %v114, %v113
  %v116 = vmul.f32 0.5, %v115
  %v117 = vsub.f32 1.5, %v116
  %v118 = vmul.f32 %v113, %v117
  %vm119 = vweird.f32 %v82
  %vm120 = vweird.f32 %v113
  %vm121 = vmor %vm119, %vm120
  %v122 = vsel %vm121, %v113, %v118
  %v123 = vmul.f32 %v55, %v92
  %v124 = vmul.f32 %v56, %v102
  %v125 = vmul.f32 %v57, %v112
  %v126 = vmul.f32 %v58, %v122
  %v128 = vperm.slane %v24, 0
  %v130 = vmul.f32 %v123, %v128
  %v131 = vmul.f32 %v124, %v128
  %v132 = vmul.f32 %v125, %v128
  %v133 = vmul.f32 %v126, %v128
  %v135 = vperm.slane %v25, 0
  %v137 = vadd.f32 %v130, %v135
  %v138 = vadd.f32 %v131, %v135
  %v139 = vadd.f32 %v132, %v135
  %v140 = vadd.f32 %v133, %v135
  %v141 = vld [vmem:[%s1] sm:$0xff]
  %v142 = vld [vmem:[%s1 + $0x8] sm:$0xff]
  %v143 = vld [vmem:[%s1 + $0x10] sm:$0xff]
  %v144 = vld [vmem:[%s1 + $0x18] sm:$0xff]
  %v145 = vld [vmem:[%s2] sm:$0x1]
  %v147 = vperm.slane %v145, 0
  %v150 = vsel %vm31, %v137, 0
  %v153 = vsel %vm31, %v138, 0
  %v156 = vsel %vm31, %v139, 0
  %v159 = vsel %vm31, %v140, 0
  %161 = vmatpush.msra.mxu0 0.0
  %162 = vmatpush.msra.mxu0 0.0
  %163 = vmatpush.msra.mxu0 0.0
  %164 = vmatpush.msra.mxu0 0.0
  %165 = vmatpush.msra.mxu0 0.0
  %166 = vmatpush.msra.mxu0 0.0
  %167 = vmatpush.msra.mxu0 0.0
  %168 = vmatpush.msra.mxu0 0.0
  %169 = vmatpush.msra.mxu0 0.0
  %170 = vmatpush.msra.mxu0 0.0
  %171 = vmatpush.msra.mxu0 0.0
  %172 = vmatpush.msra.mxu0 0.0
  %173 = vmatpush.msra.mxu0 %v144
  %174 = vmatpush.msra.mxu0 %v143
  %175 = vmatpush.msra.mxu0 %v142
  %176 = vmatpush.msra.mxu0 %v141
  %177 = vmatmul.f32.gmra.mxu0 %v150
  %v178 = vpop.f32.mrf.mxu0
  %v179 = vadd.f32 %v147, %v178
  %180 = vmatmul.f32.gmra.mxu0 %v153
  %v181 = vpop.f32.mrf.mxu0
  %v182 = vadd.f32 %v147, %v181
  %183 = vmatmul.f32.gmra.mxu0 %v156
  %v184 = vpop.f32.mrf.mxu0
  %v185 = vadd.f32 %v147, %v184
  %186 = vmatmul.f32.gmra.mxu0 %v159
  %v187 = vpop.f32.mrf.mxu0
  %v188 = vadd.f32 %v147, %v187
  %189 = vdwg.mxu0
  %v190 = vsel %vm31, %v179, 0.0
  %191 = vadd.xlane.f32.xlu0 %v190
  %v192 = vpop.xlane.xlu0 %191
  %v193 = vsel %vm31, %v182, 0.0
  %194 = vadd.xlane.f32.xlu0 %v193
  %v195 = vpop.xlane.xlu0 %194
  %v196 = vsel %vm31, %v185, 0.0
  %197 = vadd.xlane.f32.xlu0 %v196
  %v198 = vpop.xlane.xlu0 %197
  %v199 = vsel %vm31, %v188, 0.0
  %200 = vadd.xlane.f32.xlu0 %v199
  %v201 = vpop.xlane.xlu0 %200
  %v202 = vmul.f32 %v192, %v50
  %v203 = vmul.f32 %v195, %v50
  %v204 = vmul.f32 %v198, %v50
  %v205 = vmul.f32 %v201, %v50
  %v206 = vsub.f32 %v179, %v202
  %v207 = vsub.f32 %v182, %v203
  %v208 = vsub.f32 %v185, %v204
  %v209 = vsub.f32 %v188, %v205
  %v210 = vmul.f32 %v206, %v206
  %v211 = vmul.f32 %v207, %v207
  %v212 = vmul.f32 %v208, %v208
  %v213 = vmul.f32 %v209, %v209
  %v214 = vsel %vm31, %v210, 0.0
  %215 = vadd.xlane.f32.xlu0 %v214
  %v216 = vpop.xlane.xlu0 %215
  %v217 = vsel %vm31, %v211, 0.0
  %218 = vadd.xlane.f32.xlu0 %v217
  %v219 = vpop.xlane.xlu0 %218
  %v220 = vsel %vm31, %v212, 0.0
  %221 = vadd.xlane.f32.xlu0 %v220
  %v222 = vpop.xlane.xlu0 %221
  %v223 = vsel %vm31, %v213, 0.0
  %224 = vadd.xlane.f32.xlu0 %v223
  %v225 = vpop.xlane.xlu0 %224
  %v226 = vmul.f32 %v216, %v50
  %v227 = vmul.f32 %v219, %v50
  %v228 = vmul.f32 %v222, %v50
  %v229 = vmul.f32 %v225, %v50
  %v230 = vadd.f32 %v226, 1e-05
  %v231 = vadd.f32 %v227, 1e-05
  %v232 = vadd.f32 %v228, 1e-05
  %v233 = vadd.f32 %v229, 1e-05
  %v234 = vrsqrt.pop %v230
  %v235 = vmul.f32 %v234, %v230
  %v236 = vmul.f32 %v235, %v234
  %v237 = vmul.f32 0.5, %v236
  %v238 = vsub.f32 1.5, %v237
  %v239 = vmul.f32 %v234, %v238
  %vm240 = vweird.f32 %v230
  %vm241 = vweird.f32 %v234
  %vm242 = vmor %vm240, %vm241
  %v243 = vsel %vm242, %v234, %v239
  %v244 = vrsqrt.pop %v231
  %v245 = vmul.f32 %v244, %v231
  %v246 = vmul.f32 %v245, %v244
  %v247 = vmul.f32 0.5, %v246
  %v248 = vsub.f32 1.5, %v247
  %v249 = vmul.f32 %v244, %v248
  %vm250 = vweird.f32 %v231
  %vm251 = vweird.f32 %v244
  %vm252 = vmor %vm250, %vm251
  %v253 = vsel %vm252, %v244, %v249
  %v254 = vrsqrt.pop %v232
  %v255 = vmul.f32 %v254, %v232
  %v256 = vmul.f32 %v255, %v254
  %v257 = vmul.f32 0.5, %v256
  %v258 = vsub.f32 1.5, %v257
  %v259 = vmul.f32 %v254, %v258
  %vm260 = vweird.f32 %v232
  %vm261 = vweird.f32 %v254
  %vm262 = vmor %vm260, %vm261
  %v263 = vsel %vm262, %v254, %v259
  %v264 = vrsqrt.pop %v233
  %v265 = vmul.f32 %v264, %v233
  %v266 = vmul.f32 %v265, %v264
  %v267 = vmul.f32 0.5, %v266
  %v268 = vsub.f32 1.5, %v267
  %v269 = vmul.f32 %v264, %v268
  %vm270 = vweird.f32 %v233
  %vm271 = vweird.f32 %v264
  %vm272 = vmor %vm270, %vm271
  %v273 = vsel %vm272, %v264, %v269
  %v274 = vmul.f32 %v206, %v243
  %v275 = vmul.f32 %v207, %v253
  %v276 = vmul.f32 %v208, %v263
  %v277 = vmul.f32 %v209, %v273
  %v278 = vmul.f32 %v274, %v128
  %v279 = vmul.f32 %v275, %v128
  %v280 = vmul.f32 %v276, %v128
  %v281 = vmul.f32 %v277, %v128
  %v282 = vadd.f32 %v278, %v135
  %v283 = vadd.f32 %v279, %v135
  %v284 = vadd.f32 %v280, %v135
  %v285 = vadd.f32 %v281, %v135
  %290 = vrot.lane.b32.xlu0 %v179, 95
  %v291 = vpop.permute.xlu0 %290
  %292 = vrot.lane.b32.xlu0 %v182, 95
  %v293 = vpop.permute.xlu0 %292
  %294 = vrot.lane.b32.xlu0 %v185, 95
  %v295 = vpop.permute.xlu0 %294
  %296 = vrot.lane.b32.xlu0 %v188, 95
  %v297 = vpop.permute.xlu0 %296
  %302 = vxpose.xlu0.b32.start [1/16] %v291, 128
  %303 = vxpose.xlu0.b32.cont [2/16] 0.0, 128
  %304 = vxpose.xlu0.b32.cont [3/16] 0.0, 128
  %305 = vxpose.xlu0.b32.cont [4/16] 0.0, 128
  %306 = vxpose.xlu0.b32.cont [5/16] 0.0, 128
  %307 = vxpose.xlu0.b32.cont [6/16] 0.0, 128
  %308 = vxpose.xlu0.b32.cont [7/16] 0.0, 128
  %309 = vxpose.xlu0.b32.cont [8/16] 0.0, 128
  %310 = vxpose.xlu0.b32.cont [9/16] 0.0, 128
  %311 = vxpose.xlu0.b32.cont [10/16] 0.0, 128
  %312 = vxpose.xlu0.b32.cont [11/16] 0.0, 128
  %313 = vxpose.xlu0.b32.cont [12/16] 0.0, 128
  %314 = vxpose.xlu0.b32.cont [13/16] 0.0, 128
  %315 = vxpose.xlu0.b32.cont [14/16] 0.0, 128
  %316 = vxpose.xlu0.b32.cont [15/16] 0.0, 128
  %317 = vxpose.xlu0.b32.end [16/16] 0.0, 128
  %v318 = vpop.trf.xlu0
  %v319 = vpop.trf.xlu0
  %v320 = vpop.trf.xlu0
  %v321 = vpop.trf.xlu0
  %v322 = vpop.trf.xlu0
  %v323 = vpop.trf.xlu0
  %v324 = vpop.trf.xlu0
  %v325 = vpop.trf.xlu0
  %v326 = vpop.trf.xlu0
  %v327 = vpop.trf.xlu0
  %v328 = vpop.trf.xlu0
  %v329 = vpop.trf.xlu0
  %v330 = vpop.trf.xlu0
  %v331 = vpop.trf.xlu0
  %v332 = vpop.trf.xlu0
  %v333 = vpop.trf.xlu0
  %334 = vxpose.xlu0.b32.start [1/16] %v293, 128
  %335 = vxpose.xlu0.b32.cont [2/16] 0.0, 128
  %336 = vxpose.xlu0.b32.cont [3/16] 0.0, 128
  %337 = vxpose.xlu0.b32.cont [4/16] 0.0, 128
  %338 = vxpose.xlu0.b32.cont [5/16] 0.0, 128
  %339 = vxpose.xlu0.b32.cont [6/16] 0.0, 128
  %340 = vxpose.xlu0.b32.cont [7/16] 0.0, 128
  %341 = vxpose.xlu0.b32.cont [8/16] 0.0, 128
  %342 = vxpose.xlu0.b32.cont [9/16] 0.0, 128
  %343 = vxpose.xlu0.b32.cont [10/16] 0.0, 128
  %344 = vxpose.xlu0.b32.cont [11/16] 0.0, 128
  %345 = vxpose.xlu0.b32.cont [12/16] 0.0, 128
  %346 = vxpose.xlu0.b32.cont [13/16] 0.0, 128
  %347 = vxpose.xlu0.b32.cont [14/16] 0.0, 128
  %348 = vxpose.xlu0.b32.cont [15/16] 0.0, 128
  %349 = vxpose.xlu0.b32.end [16/16] 0.0, 128
  %v350 = vpop.trf.xlu0
  %v351 = vpop.trf.xlu0
  %v352 = vpop.trf.xlu0
  %v353 = vpop.trf.xlu0
  %v354 = vpop.trf.xlu0
  %v355 = vpop.trf.xlu0
  %v356 = vpop.trf.xlu0
  %v357 = vpop.trf.xlu0
  %v358 = vpop.trf.xlu0
  %v359 = vpop.trf.xlu0
  %v360 = vpop.trf.xlu0
  %v361 = vpop.trf.xlu0
  %v362 = vpop.trf.xlu0
  %v363 = vpop.trf.xlu0
  %v364 = vpop.trf.xlu0
  %v365 = vpop.trf.xlu0
  %366 = vxpose.xlu0.b32.start [1/16] %v295, 128
  %367 = vxpose.xlu0.b32.cont [2/16] 0.0, 128
  %368 = vxpose.xlu0.b32.cont [3/16] 0.0, 128
  %369 = vxpose.xlu0.b32.cont [4/16] 0.0, 128
  %370 = vxpose.xlu0.b32.cont [5/16] 0.0, 128
  %371 = vxpose.xlu0.b32.cont [6/16] 0.0, 128
  %372 = vxpose.xlu0.b32.cont [7/16] 0.0, 128
  %373 = vxpose.xlu0.b32.cont [8/16] 0.0, 128
  %374 = vxpose.xlu0.b32.cont [9/16] 0.0, 128
  %375 = vxpose.xlu0.b32.cont [10/16] 0.0, 128
  %376 = vxpose.xlu0.b32.cont [11/16] 0.0, 128
  %377 = vxpose.xlu0.b32.cont [12/16] 0.0, 128
  %378 = vxpose.xlu0.b32.cont [13/16] 0.0, 128
  %379 = vxpose.xlu0.b32.cont [14/16] 0.0, 128
  %380 = vxpose.xlu0.b32.cont [15/16] 0.0, 128
  %381 = vxpose.xlu0.b32.end [16/16] 0.0, 128
  %v382 = vpop.trf.xlu0
  %v383 = vpop.trf.xlu0
  %v384 = vpop.trf.xlu0
  %v385 = vpop.trf.xlu0
  %v386 = vpop.trf.xlu0
  %v387 = vpop.trf.xlu0
  %v388 = vpop.trf.xlu0
  %v389 = vpop.trf.xlu0
  %v390 = vpop.trf.xlu0
  %v391 = vpop.trf.xlu0
  %v392 = vpop.trf.xlu0
  %v393 = vpop.trf.xlu0
  %v394 = vpop.trf.xlu0
  %v395 = vpop.trf.xlu0
  %v396 = vpop.trf.xlu0
  %v397 = vpop.trf.xlu0
  %398 = vxpose.xlu0.b32.start [1/16] %v297, 128
  %399 = vxpose.xlu0.b32.cont [2/16] 0.0, 128
  %400 = vxpose.xlu0.b32.cont [3/16] 0.0, 128
  %401 = vxpose.xlu0.b32.cont [4/16] 0.0, 128
  %402 = vxpose.xlu0.b32.cont [5/16] 0.0, 128
  %403 = vxpose.xlu0.b32.cont [6/16] 0.0, 128
  %404 = vxpose.xlu0.b32.cont [7/16] 0.0, 128
  %405 = vxpose.xlu0.b32.cont [8/16] 0.0, 128
  %406 = vxpose.xlu0.b32.cont [9/16] 0.0, 128
  %407 = vxpose.xlu0.b32.cont [10/16] 0.0, 128
  %408 = vxpose.xlu0.b32.cont [11/16] 0.0, 128
  %409 = vxpose.xlu0.b32.cont [12/16] 0.0, 128
  %410 = vxpose.xlu0.b32.cont [13/16] 0.0, 128
  %411 = vxpose.xlu0.b32.cont [14/16] 0.0, 128
  %412 = vxpose.xlu0.b32.cont [15/16] 0.0, 128
  %413 = vxpose.xlu0.b32.end [16/16] 0.0, 128
  %v414 = vpop.trf.xlu0
  %v415 = vpop.trf.xlu0
  %v416 = vpop.trf.xlu0
  %v417 = vpop.trf.xlu0
  %v418 = vpop.trf.xlu0
  %v419 = vpop.trf.xlu0
  %v420 = vpop.trf.xlu0
  %v421 = vpop.trf.xlu0
  %v422 = vpop.trf.xlu0
  %v423 = vpop.trf.xlu0
  %v424 = vpop.trf.xlu0
  %v425 = vpop.trf.xlu0
  %v426 = vpop.trf.xlu0
  %v427 = vpop.trf.xlu0
  %v428 = vpop.trf.xlu0
  %v429 = vpop.trf.xlu0
  %430 = vset.pattern.permute.xlu0 32
  %431 = vperm.xlu0 %430, %v179
  %v432 = vpop.permute.xlu0 %431
  %434 = vset.pattern.permute.xlu0 32
  %435 = vperm.xlu0 %434, %v182
  %v436 = vpop.permute.xlu0 %435
  %438 = vset.pattern.permute.xlu0 32
  %439 = vperm.xlu0 %438, %v185
  %v440 = vpop.permute.xlu0 %439
  %442 = vset.pattern.permute.xlu0 32
  %443 = vperm.xlu0 %442, %v188
  %v444 = vpop.permute.xlu0 %443
  %v446 = vperm.slane %v318, 0
  %v447 = vperm.slane %v350, 0
  %v448 = vperm.slane %v382, 0
  %v449 = vperm.slane %v414, 0
  %v450 = vadd.f32 %v432, %v446
  %v451 = vadd.f32 %v436, %v447
  %v452 = vadd.f32 %v440, %v448
  %v453 = vadd.f32 %v444, %v449
  %v454 = vstv %s26
  %v455 = vadd.f32 %v450, %v454
  %v456 = vadd.f32 %v451, %v454
  %v457 = vadd.f32 %v452, %v454
  %v458 = vadd.f32 %v453, %v454
  %vm459 = vcmp.ge.f32.partialorder %v455, 0.0
  %vm460 = vcmp.ge.f32.partialorder %v456, 0.0
  %vm461 = vcmp.ge.f32.partialorder %v457, 0.0
  %vm462 = vcmp.ge.f32.partialorder %v458, 0.0
  %v463 = vmul.f32 %v455, 0.01
  %v464 = vmul.f32 %v456, 0.01
  %v465 = vmul.f32 %v457, 0.01
  %v466 = vmul.f32 %v458, 0.01
  %v467 = vsel %vm459, %v455, %v463
  %v468 = vsel %vm460, %v456, %v464
  %v469 = vsel %vm461, %v457, %v465
  %v470 = vsel %vm462, %v458, %v466
  %vm471 = vcmask 64513
  %v472 = vsel %vm471, %v467, -inf
  %473 = vmax.xlane.f32.xlu0 %v472
  %v474 = vpop.xlane.xlu0 %473
  %v475 = vsel %vm471, %v468, -inf
  %476 = vmax.xlane.f32.xlu0 %v475
  %v477 = vpop.xlane.xlu0 %476
  %v478 = vsel %vm471, %v469, -inf
  %479 = vmax.xlane.f32.xlu0 %v478
  %v480 = vpop.xlane.xlu0 %479
  %v481 = vsel %vm471, %v470, -inf
  %482 = vmax.xlane.f32.xlu0 %v481
  %v483 = vpop.xlane.xlu0 %482
  %v484 = vsub.f32 %v467, %v474
  %v485 = vsub.f32 %v468, %v477
  %v486 = vsub.f32 %v469, %v480
  %v487 = vsub.f32 %v470, %v483
  %v488 = vmul.f32 %v484, 1.442695
  %v489 = vpow.pop %v488
  %v490 = vmul.f32 %v485, 1.442695
  %v491 = vpow.pop %v490
  %v492 = vmul.f32 %v486, 1.442695
  %v493 = vpow.pop %v492
  %v494 = vmul.f32 %v487, 1.442695
  %v495 = vpow.pop %v494
  %v496 = vsel %vm471, %v489, 0.0
  %497 = vadd.xlane.f32.xlu0 %v496
  %v498 = vpop.xlane.xlu0 %497
  %v499 = vsel %vm471, %v491, 0.0
  %500 = vadd.xlane.f32.xlu0 %v499
  %v501 = vpop.xlane.xlu0 %500
  %v502 = vsel %vm471, %v493, 0.0
  %503 = vadd.xlane.f32.xlu0 %v502
  %v504 = vpop.xlane.xlu0 %503
  %v505 = vsel %vm471, %v495, 0.0
  %506 = vadd.xlane.f32.xlu0 %v505
  %v507 = vpop.xlane.xlu0 %506
  %v508 = vrcp.pop %v498
  %v509 = vmul.f32 %v498, %v508
  %v510 = vsub.f32 1.0, %v509
  %v511 = vmul.f32 %v508, %v510
  %v512 = vadd.f32 %v508, %v511
  %vm513 = vweird.f32 %v498
  %vm514 = vweird.f32 %v508
  %vm515 = vmor %vm513, %vm514
  %v516 = vsel %vm515, %v508, %v512
  %v517 = vand.u32 2147483647, %v498
  %vm518 = vcmp.eq.f32.partialorder %v517, 8.507059e+37
  %v519 = vand.u32 %v498, 2147483648
  %v520 = vor.u32 1.1754944e-38, %v519
  %v521 = vsel %vm518, %v520, %v516
  %v522 = vrcp.pop %v501
  %v523 = vmul.f32 %v501, %v522
  %v524 = vsub.f32 1.0, %v523
  %v525 = vmul.f32 %v522, %v524
  %v526 = vadd.f32 %v522, %v525
  %vm527 = vweird.f32 %v501
  %vm528 = vweird.f32 %v522
  %vm529 = vmor %vm527, %vm528
  %v530 = vsel %vm529, %v522, %v526
  %v531 = vand.u32 2147483647, %v501
  %vm532 = vcmp.eq.f32.partialorder %v531, 8.507059e+37
  %v533 = vand.u32 %v501, 2147483648
  %v534 = vor.u32 1.1754944e-38, %v533
  %v535 = vsel %vm532, %v534, %v530
  %v536 = vrcp.pop %v504
  %v537 = vmul.f32 %v504, %v536
  %v538 = vsub.f32 1.0, %v537
  %v539 = vmul.f32 %v536, %v538
  %v540 = vadd.f32 %v536, %v539
  %vm541 = vweird.f32 %v504
  %vm542 = vweird.f32 %v536
  %vm543 = vmor %vm541, %vm542
  %v544 = vsel %vm543, %v536, %v540
  %v545 = vand.u32 2147483647, %v504
  %vm546 = vcmp.eq.f32.partialorder %v545, 8.507059e+37
  %v547 = vand.u32 %v504, 2147483648
  %v548 = vor.u32 1.1754944e-38, %v547
  %v549 = vsel %vm546, %v548, %v544
  %v550 = vrcp.pop %v507
  %v551 = vmul.f32 %v507, %v550
  %v552 = vsub.f32 1.0, %v551
  %v553 = vmul.f32 %v550, %v552
  %v554 = vadd.f32 %v550, %v553
  %vm555 = vweird.f32 %v507
  %vm556 = vweird.f32 %v550
  %vm557 = vmor %vm555, %vm556
  %v558 = vsel %vm557, %v550, %v554
  %v559 = vand.u32 2147483647, %v507
  %vm560 = vcmp.eq.f32.partialorder %v559, 8.507059e+37
  %v561 = vand.u32 %v507, 2147483648
  %v562 = vor.u32 1.1754944e-38, %v561
  %v563 = vsel %vm560, %v562, %v558
  %v564 = vmul.f32 %v489, %v521
  %v565 = vmul.f32 %v491, %v535
  %v566 = vmul.f32 %v493, %v549
  %v567 = vmul.f32 %v495, %v563
  %v569 = vrot.slane %v564, 1
  %vm570 = vcmask 64512
  %v571 = vsel %vm570, %v569, 0
  %573 = vmatpush.msra.mxu0 0.0
  %574 = vmatpush.msra.mxu0 0.0
  %575 = vmatpush.msra.mxu0 0.0
  %576 = vmatpush.msra.mxu0 0.0
  %577 = vmatpush.msra.mxu0 0.0
  %578 = vmatpush.msra.mxu0 0.0
  %579 = vmatpush.msra.mxu0 0.0
  %580 = vmatpush.msra.mxu0 0.0
  %581 = vmatpush.msra.mxu0 0.0
  %582 = vmatpush.msra.mxu0 0.0
  %583 = vmatpush.msra.mxu0 0.0
  %584 = vmatpush.msra.mxu0 0.0
  %585 = vmatpush.msra.mxu0 0.0
  %586 = vmatpush.msra.mxu0 0.0
  %587 = vmatpush.msra.mxu0 0.0
  %588 = vmatpush.msra.mxu0 %v282
  %589 = vmatmul.f32.gmra.mxu0 %v571
  %v590 = vpop.f32.mrf.mxu0
  %v591 = vadd.f32 0.0, %v590
  %592 = vdwg.mxu0
  %v594 = vrot.slane %v565, 1
  %v595 = vsel %vm570, %v594, 0
  %597 = vmatpush.msra.mxu0 0.0
  %598 = vmatpush.msra.mxu0 0.0
  %599 = vmatpush.msra.mxu0 0.0
  %600 = vmatpush.msra.mxu0 0.0
  %601 = vmatpush.msra.mxu0 0.0
  %602 = vmatpush.msra.mxu0 0.0
  %603 = vmatpush.msra.mxu0 0.0
  %604 = vmatpush.msra.mxu0 0.0
  %605 = vmatpush.msra.mxu0 0.0
  %606 = vmatpush.msra.mxu0 0.0
  %607 = vmatpush.msra.mxu0 0.0
  %608 = vmatpush.msra.mxu0 0.0
  %609 = vmatpush.msra.mxu0 0.0
  %610 = vmatpush.msra.mxu0 0.0
  %611 = vmatpush.msra.mxu0 0.0
  %612 = vmatpush.msra.mxu0 %v283
  %613 = vmatmul.f32.gmra.mxu0 %v595
  %v614 = vpop.f32.mrf.mxu0
  %v615 = vadd.f32 0.0, %v614
  %616 = vdwg.mxu0
  %v618 = vrot.slane %v566, 1
  %v619 = vsel %vm570, %v618, 0
  %621 = vmatpush.msra.mxu0 0.0
  %622 = vmatpush.msra.mxu0 0.0
  %623 = vmatpush.msra.mxu0 0.0
  %624 = vmatpush.msra.mxu0 0.0
  %625 = vmatpush.msra.mxu0 0.0
  %626 = vmatpush.msra.mxu0 0.0
  %627 = vmatpush.msra.mxu0 0.0
  %628 = vmatpush.msra.mxu0 0.0
  %629 = vmatpush.msra.mxu0 0.0
  %630 = vmatpush.msra.mxu0 0.0
  %631 = vmatpush.msra.mxu0 0.0
  %632 = vmatpush.msra.mxu0 0.0
  %633 = vmatpush.msra.mxu0 0.0
  %634 = vmatpush.msra.mxu0 0.0
  %635 = vmatpush.msra.mxu0 0.0
  %636 = vmatpush.msra.mxu0 %v284
  %637 = vmatmul.f32.gmra.mxu0 %v619
  %v638 = vpop.f32.mrf.mxu0
  %v639 = vadd.f32 0.0, %v638
  %640 = vdwg.mxu0
  %v642 = vrot.slane %v567, 1
  %v643 = vsel %vm570, %v642, 0
  %645 = vmatpush.msra.mxu0 0.0
  %646 = vmatpush.msra.mxu0 0.0
  %647 = vmatpush.msra.mxu0 0.0
  %648 = vmatpush.msra.mxu0 0.0
  %649 = vmatpush.msra.mxu0 0.0
  %650 = vmatpush.msra.mxu0 0.0
  %651 = vmatpush.msra.mxu0 0.0
  %652 = vmatpush.msra.mxu0 0.0
  %653 = vmatpush.msra.mxu0 0.0
  %654 = vmatpush.msra.mxu0 0.0
  %655 = vmatpush.msra.mxu0 0.0
  %656 = vmatpush.msra.mxu0 0.0
  %657 = vmatpush.msra.mxu0 0.0
  %658 = vmatpush.msra.mxu0 0.0
  %659 = vmatpush.msra.mxu0 0.0
  %660 = vmatpush.msra.mxu0 %v285
  %661 = vmatmul.f32.gmra.mxu0 %v643
  %v662 = vpop.f32.mrf.mxu0
  %v663 = vadd.f32 0.0, %v662
  %664 = vdwg.mxu0
  %vm665 = vcmp.ge.f32.partialorder %v591, 0.0
  %vm666 = vcmp.ge.f32.partialorder %v615, 0.0
  %vm667 = vcmp.ge.f32.partialorder %v639, 0.0
  %vm668 = vcmp.ge.f32.partialorder %v663, 0.0
  %v669 = vmul.f32 %v591, 0.01
  %v670 = vmul.f32 %v615, 0.01
  %v671 = vmul.f32 %v639, 0.01
  %v672 = vmul.f32 %v663, 0.01
  %v673 = vsel %vm665, %v591, %v669
  %v674 = vsel %vm666, %v615, %v670
  %v675 = vsel %vm667, %v639, %v671
  %v676 = vsel %vm668, %v663, %v672
  %vm677 = vcmask 260096
  %678 = vst.msk [vmem:[%s6] sm:$0x7f] %vm677, %v673
  %679 = vst.msk [vmem:[%s6 + $0x8] sm:$0x7f] %vm677, %v674
  %680 = vst.msk [vmem:[%s6 + $0x10] sm:$0x7f] %vm677, %v675
  %681 = vst.msk [vmem:[%s6 + $0x18] sm:$0x7f] %vm677, %v676
  // Predicated region
  $region26: #{att0_12_forward.1} parent=0 // pred_check
    _
  $region27: #{att0_12_forward.1} parent=0 // pred_check_branch
    %683 = sbr.rel (0) target = $region29
  $region28: #{att0_12_forward.1} parent=0 // pred_region
    _
  $region29: #{att0_12_forward.1} parent=0 // pred_fallthru
    _
  // Predicated region
  $region30: #{att0_12_forward.1} parent=0 // pred_check
    _
  $region31: #{att0_12_forward.1} parent=0 // pred_check_branch
    %685 = sbr.rel (0) target = $region33
  $region32: #{att0_12_forward.1} parent=0 // pred_region
    _
  $region33: #{att0_12_forward.1} parent=0 // pred_fallthru
    _

</llo_original>
